<compile_context>
chip_gen: v5e
topology: v5e:2x2
jax: 0.10.0
libtpu: 0.0.40
codegen_flags: <defaults>
</compile_context>

<pallas_src>
import jax
import jax.numpy as jnp
from jax.experimental import pallas as pl
from jax.experimental.pallas import tpu as pltpu

N_STATES = 16        # argparse `args.state`   -> small synthetic value
N_ACTIONS = 4        # argparse `args.actions` -> small synthetic value
BATCH = 2
H1, H2, H3 = 512, 256, 128
DROP_P = 0.9         # F.dropout(x, p=0.9), training=True (PyTorch default)
HEAD_PAD = 128       # fused V|A head padded to a full lane width


def _round_up(a, b):
    return (a + b - 1) // b * b


def net_kernel(x_ref, m1_ref, m2_ref, m3_ref,
               w1_ref, b1_ref, w2_ref, b2_ref, w3_ref, b3_ref,
               wh_ref, bh_ref, out_ref):
    # fc1 -> relu -> dropout (mask is pre-scaled by 1/keep)
    h = jnp.dot(x_ref[...].astype(jnp.bfloat16), w1_ref[...],
                preferred_element_type=jnp.float32) + b1_ref[...]
    h = jnp.maximum(h, 0.0) * m1_ref[...]

    # fc2 -> relu -> dropout
    h = jnp.dot(h.astype(jnp.bfloat16), w2_ref[...],
                preferred_element_type=jnp.float32) + b2_ref[...]
    h = jnp.maximum(h, 0.0) * m2_ref[...]

    # fc3 -> relu -> dropout
    h = jnp.dot(h.astype(jnp.bfloat16), w3_ref[...],
                preferred_element_type=jnp.float32) + b3_ref[...]
    h = jnp.maximum(h, 0.0) * m3_ref[...]

    # fused head: cols [0:N_ACTIONS] = advantage, col N_ACTIONS = value, rest 0
    head = jnp.dot(h.astype(jnp.bfloat16), wh_ref[...],
                   preferred_element_type=jnp.float32) + bh_ref[...]

    lane = jax.lax.broadcasted_iota(jnp.int32, head.shape, 1)
    a_mask = lane < N_ACTIONS
    a_sum = jnp.sum(jnp.where(a_mask, head, 0.0), axis=1, keepdims=True)
    a_mean = a_sum * (1.0 / N_ACTIONS)
    v = jnp.sum(jnp.where(lane == N_ACTIONS, head, 0.0), axis=1, keepdims=True)

    # dueling combine on the action lanes; padding lanes zeroed
    q = jnp.where(a_mask, head + (v - a_mean), 0.0)
    out_ref[...] = q.astype(out_ref.dtype)


def net_forward(x, params, dropout_key):
    (w1, b1, w2, b2, w3, b3, wh, bh) = params
    B = x.shape[0]

    # Batch tiling: 128-row tiles when the batch is large, otherwise one
    # 8-row-aligned tile.  Grid axis is 'parallel' (v7x: both TensorCores).
    TB = min(_round_up(max(B, 1), 8), 128)
    B_pad = _round_up(B, TB)
    n_tiles = B_pad // TB
    if B_pad != B:
        x = jnp.pad(x, ((0, B_pad - B), (0, 0)))

    keep = 1.0 - DROP_P
    inv_keep = 1.0 / keep
    k1, k2, k3 = jax.random.split(dropout_key, 3)
    m1 = jax.random.bernoulli(k1, keep, (B_pad, H1)).astype(jnp.float32) * inv_keep
    m2 = jax.random.bernoulli(k2, keep, (B_pad, H2)).astype(jnp.float32) * inv_keep
    m3 = jax.random.bernoulli(k3, keep, (B_pad, H3)).astype(jnp.float32) * inv_keep

    tile = lambda h: pl.BlockSpec((TB, h), lambda i: (i, 0))        # per-batch-tile
    full = lambda r, c: pl.BlockSpec((r, c), lambda i: (0, 0))      # resident weights

    q_pad = pl.pallas_call(
        net_kernel,
        out_shape=jax.ShapeDtypeStruct((B_pad, HEAD_PAD), jnp.float32),
        grid=(n_tiles,),
        in_specs=[
            tile(N_STATES),                 # x
            tile(H1), tile(H2), tile(H3),   # dropout masks
            full(N_STATES, H1), full(1, H1),
            full(H1, H2),       full(1, H2),
            full(H2, H3),       full(1, H3),
            full(H3, HEAD_PAD), full(1, HEAD_PAD),
        ],
        out_specs=pl.BlockSpec((TB, HEAD_PAD), lambda i: (i, 0)),
        compiler_params=pltpu.CompilerParams(
            dimension_semantics=("parallel",),
            vmem_limit_bytes=8 << 20,
        ),
    )(x, m1, m2, m3, w1, b1, w2, b2, w3, b3, wh, bh)

    return q_pad[:B, :N_ACTIONS]


def init_params(key):
    """Matches the PyTorch module: weights ~ Normal(0, 0.1); biases use the
    default nn.Linear uniform init.  Weights stored bf16 (MXU inputs),
    biases f32 (added after f32 accumulation)."""
    ks = jax.random.split(key, 10)

    def linear(kw, kb, fan_in, fan_out):
        w = (0.1 * jax.random.normal(kw, (fan_in, fan_out), jnp.float32))
        bound = 1.0 / (fan_in ** 0.5)
        b = jax.random.uniform(kb, (1, fan_out), jnp.float32, -bound, bound)
        return w.astype(jnp.bfloat16), b

    w1, b1 = linear(ks[0], ks[1], N_STATES, H1)
    w2, b2 = linear(ks[2], ks[3], H1, H2)
    w3, b3 = linear(ks[4], ks[5], H2, H3)
    wv, bv = linear(ks[6], ks[7], H3, 1)
    wa, ba = linear(ks[8], ks[9], H3, N_ACTIONS)

    # Fused, lane-padded head: cols [0:N_ACTIONS]=A, col N_ACTIONS=V, rest 0.
    wh = jnp.zeros((H3, HEAD_PAD), jnp.bfloat16)
    wh = wh.at[:, :N_ACTIONS].set(wa)
    wh = wh.at[:, N_ACTIONS].set(wv[:, 0])
    bh = jnp.zeros((1, HEAD_PAD), jnp.float32)
    bh = bh.at[:, :N_ACTIONS].set(ba)
    bh = bh.at[:, N_ACTIONS].set(bv[:, 0])

    return (w1, b1, w2, b2, w3, b3, wh, bh)


if __name__ == "__main__":
    key = jax.random.PRNGKey(0)
    k_params, k_x, k_drop = jax.random.split(key, 3)

    params = init_params(k_params)
    x = jax.random.normal(k_x, (BATCH, N_STATES), jnp.float32)

    q = net_forward(x, params, k_drop)
    q = jax.block_until_ready(q)

    assert q.shape == (BATCH, N_ACTIONS)
    assert bool(jnp.all(jnp.isfinite(q)))
    print("KERNEL_OK")
</pallas_src>

<mosaic_0001>
module attributes {stable_mosaic.version = 11 : i64} {
  func.func @net_kernel(%arg0: i32, %arg1: memref<8x16xf32, #tpu.memory_space<vmem>>, %arg2: memref<8x512xf32, #tpu.memory_space<vmem>>, %arg3: memref<8x256xf32, #tpu.memory_space<vmem>>, %arg4: memref<8x128xf32, #tpu.memory_space<vmem>>, %arg5: memref<16x512xbf16, #tpu.memory_space<vmem>>, %arg6: memref<1x512xf32, #tpu.memory_space<vmem>>, %arg7: memref<512x256xbf16, #tpu.memory_space<vmem>>, %arg8: memref<1x256xf32, #tpu.memory_space<vmem>>, %arg9: memref<256x128xbf16, #tpu.memory_space<vmem>>, %arg10: memref<1x128xf32, #tpu.memory_space<vmem>>, %arg11: memref<128x128xbf16, #tpu.memory_space<vmem>>, %arg12: memref<1x128xf32, #tpu.memory_space<vmem>>, %arg13: memref<8x128xf32, #tpu.memory_space<vmem>>) attributes {dimension_semantics = [#tpu.dimension_semantics<parallel>], iteration_bounds = array<i64: 1>, scalar_prefetch = 0 : i64, scratch_operands = 0 : i64, tpu.core_type = #tpu.core_type<tc>, window_params = [{transform_indices = @transform_0, window_bounds = array<i64: 8, 16>}, {transform_indices = @transform_1, window_bounds = array<i64: 8, 512>}, {transform_indices = @transform_2, window_bounds = array<i64: 8, 256>}, {transform_indices = @transform_3, window_bounds = array<i64: 8, 128>}, {pipeline_mode = #tpu.pipeline_mode<synchronous>, transform_indices = @transform_4, window_bounds = array<i64: 16, 512>}, {pipeline_mode = #tpu.pipeline_mode<synchronous>, transform_indices = @transform_5, window_bounds = array<i64: 1, 512>}, {pipeline_mode = #tpu.pipeline_mode<synchronous>, transform_indices = @transform_6, window_bounds = array<i64: 512, 256>}, {pipeline_mode = #tpu.pipeline_mode<synchronous>, transform_indices = @transform_7, window_bounds = array<i64: 1, 256>}, {pipeline_mode = #tpu.pipeline_mode<synchronous>, transform_indices = @transform_8, window_bounds = array<i64: 256, 128>}, {pipeline_mode = #tpu.pipeline_mode<synchronous>, transform_indices = @transform_9, window_bounds = array<i64: 1, 128>}, {pipeline_mode = #tpu.pipeline_mode<synchronous>, transform_indices = @transform_10, window_bounds = array<i64: 128, 128>}, {pipeline_mode = #tpu.pipeline_mode<synchronous>, transform_indices = @transform_11, window_bounds = array<i64: 1, 128>}, {transform_indices = @transform_12, window_bounds = array<i64: 8, 128>}]} {
    %c0 = arith.constant 0 : index
    %c0_0 = arith.constant 0 : index
    %0 = vector.load %arg1[%c0, %c0_0] : memref<8x16xf32, #tpu.memory_space<vmem>>, vector<8x16xf32>
    %1 = arith.truncf %0 : vector<8x16xf32> to vector<8x16xbf16>
    %c0_1 = arith.constant 0 : index
    %c0_2 = arith.constant 0 : index
    %2 = vector.load %arg5[%c0_1, %c0_2] : memref<16x512xbf16, #tpu.memory_space<vmem>>, vector<16x512xbf16>
    %cst = arith.constant dense<0.000000e+00> : vector<8x512xf32>
    %3 = tpu.matmul %1, %2, %cst {dimension_numbers = #tpu.dot_dimension_numbers<[1], [0], [0], [1], [0, 0, 1, 1], [], []>} : vector<8x16xbf16>, vector<16x512xbf16>, vector<8x512xf32> -> vector<8x512xf32>
    %c0_3 = arith.constant 0 : index
    %c0_4 = arith.constant 0 : index
    %4 = vector.load %arg6[%c0_3, %c0_4] : memref<1x512xf32, #tpu.memory_space<vmem>>, vector<1x512xf32>
    %5 = vector.broadcast %4 : vector<1x512xf32> to vector<8x512xf32>
    %6 = arith.addf %3, %5 : vector<8x512xf32>
    %cst_5 = arith.constant 0.000000e+00 : f32
    %7 = vector.broadcast %cst_5 : f32 to vector<8x512xf32>
    %8 = arith.maximumf %6, %7 : vector<8x512xf32>
    %c0_6 = arith.constant 0 : index
    %c0_7 = arith.constant 0 : index
    %9 = vector.load %arg2[%c0_6, %c0_7] : memref<8x512xf32, #tpu.memory_space<vmem>>, vector<8x512xf32>
    %10 = arith.mulf %8, %9 : vector<8x512xf32>
    %11 = arith.truncf %10 : vector<8x512xf32> to vector<8x512xbf16>
    %c0_8 = arith.constant 0 : index
    %c0_9 = arith.constant 0 : index
    %12 = vector.load %arg7[%c0_8, %c0_9] : memref<512x256xbf16, #tpu.memory_space<vmem>>, vector<512x256xbf16>
    %cst_10 = arith.constant dense<0.000000e+00> : vector<8x256xf32>
    %13 = tpu.matmul %11, %12, %cst_10 {dimension_numbers = #tpu.dot_dimension_numbers<[1], [0], [0], [1], [0, 0, 1, 1], [], []>} : vector<8x512xbf16>, vector<512x256xbf16>, vector<8x256xf32> -> vector<8x256xf32>
    %c0_11 = arith.constant 0 : index
    %c0_12 = arith.constant 0 : index
    %14 = vector.load %arg8[%c0_11, %c0_12] : memref<1x256xf32, #tpu.memory_space<vmem>>, vector<1x256xf32>
    %15 = vector.broadcast %14 : vector<1x256xf32> to vector<8x256xf32>
    %16 = arith.addf %13, %15 : vector<8x256xf32>
    %cst_13 = arith.constant 0.000000e+00 : f32
    %17 = vector.broadcast %cst_13 : f32 to vector<8x256xf32>
    %18 = arith.maximumf %16, %17 : vector<8x256xf32>
    %c0_14 = arith.constant 0 : index
    %c0_15 = arith.constant 0 : index
    %19 = vector.load %arg3[%c0_14, %c0_15] : memref<8x256xf32, #tpu.memory_space<vmem>>, vector<8x256xf32>
    %20 = arith.mulf %18, %19 : vector<8x256xf32>
    %21 = arith.truncf %20 : vector<8x256xf32> to vector<8x256xbf16>
    %c0_16 = arith.constant 0 : index
    %c0_17 = arith.constant 0 : index
    %22 = vector.load %arg9[%c0_16, %c0_17] : memref<256x128xbf16, #tpu.memory_space<vmem>>, vector<256x128xbf16>
    %cst_18 = arith.constant dense<0.000000e+00> : vector<8x128xf32>
    %23 = tpu.matmul %21, %22, %cst_18 {dimension_numbers = #tpu.dot_dimension_numbers<[1], [0], [0], [1], [0, 0, 1, 1], [], []>} : vector<8x256xbf16>, vector<256x128xbf16>, vector<8x128xf32> -> vector<8x128xf32>
    %c0_19 = arith.constant 0 : index
    %c0_20 = arith.constant 0 : index
    %24 = vector.load %arg10[%c0_19, %c0_20] : memref<1x128xf32, #tpu.memory_space<vmem>>, vector<1x128xf32>
    %25 = vector.broadcast %24 : vector<1x128xf32> to vector<8x128xf32>
    %26 = arith.addf %23, %25 : vector<8x128xf32>
    %cst_21 = arith.constant 0.000000e+00 : f32
    %27 = vector.broadcast %cst_21 : f32 to vector<8x128xf32>
    %28 = arith.maximumf %26, %27 : vector<8x128xf32>
    %c0_22 = arith.constant 0 : index
    %c0_23 = arith.constant 0 : index
    %29 = vector.load %arg4[%c0_22, %c0_23] : memref<8x128xf32, #tpu.memory_space<vmem>>, vector<8x128xf32>
    %30 = arith.mulf %28, %29 : vector<8x128xf32>
    %31 = arith.truncf %30 : vector<8x128xf32> to vector<8x128xbf16>
    %c0_24 = arith.constant 0 : index
    %c0_25 = arith.constant 0 : index
    %32 = vector.load %arg11[%c0_24, %c0_25] : memref<128x128xbf16, #tpu.memory_space<vmem>>, vector<128x128xbf16>
    %cst_26 = arith.constant dense<0.000000e+00> : vector<8x128xf32>
    %33 = tpu.matmul %31, %32, %cst_26 {dimension_numbers = #tpu.dot_dimension_numbers<[1], [0], [0], [1], [0, 0, 1, 1], [], []>} : vector<8x128xbf16>, vector<128x128xbf16>, vector<8x128xf32> -> vector<8x128xf32>
    %c0_27 = arith.constant 0 : index
    %c0_28 = arith.constant 0 : index
    %34 = vector.load %arg12[%c0_27, %c0_28] : memref<1x128xf32, #tpu.memory_space<vmem>>, vector<1x128xf32>
    %35 = vector.broadcast %34 : vector<1x128xf32> to vector<8x128xf32>
    %36 = arith.addf %33, %35 : vector<8x128xf32>
    %37 = tpu.iota {dimensions = array<i32: 1>} : vector<8x128xi32>
    %c4_i32 = arith.constant 4 : i32
    %38 = vector.broadcast %c4_i32 : i32 to vector<8x128xi32>
    %39 = arith.cmpi slt, %37, %38 : vector<8x128xi32>
    %cst_29 = arith.constant 0.000000e+00 : f32
    %40 = vector.broadcast %cst_29 : f32 to vector<8x128xf32>
    %41 = arith.select %39, %36, %40 : vector<8x128xi1>, vector<8x128xf32>
    %cst_30 = arith.constant dense<0.000000e+00> : vector<8xf32>
    %42 = vector.multi_reduction <add>, %41, %cst_30 [1] : vector<8x128xf32> to vector<8xf32>
    %43 = vector.shape_cast %42 : vector<8xf32> to vector<8x1xf32>
    %cst_31 = arith.constant 2.500000e-01 : f32
    %44 = vector.broadcast %cst_31 : f32 to vector<8x1xf32>
    %45 = arith.mulf %43, %44 : vector<8x1xf32>
    %c4_i32_32 = arith.constant 4 : i32
    %46 = vector.broadcast %c4_i32_32 : i32 to vector<8x128xi32>
    %47 = arith.cmpi eq, %37, %46 : vector<8x128xi32>
    %cst_33 = arith.constant 0.000000e+00 : f32
    %48 = vector.broadcast %cst_33 : f32 to vector<8x128xf32>
    %49 = arith.select %47, %36, %48 : vector<8x128xi1>, vector<8x128xf32>
    %cst_34 = arith.constant dense<0.000000e+00> : vector<8xf32>
    %50 = vector.multi_reduction <add>, %49, %cst_34 [1] : vector<8x128xf32> to vector<8xf32>
    %51 = vector.shape_cast %50 : vector<8xf32> to vector<8x1xf32>
    %52 = arith.subf %51, %45 : vector<8x1xf32>
    %53 = vector.broadcast %52 : vector<8x1xf32> to vector<8x128xf32>
    %54 = arith.addf %36, %53 : vector<8x128xf32>
    %cst_35 = arith.constant 0.000000e+00 : f32
    %55 = vector.broadcast %cst_35 : f32 to vector<8x128xf32>
    %56 = arith.select %39, %54, %55 : vector<8x128xi1>, vector<8x128xf32>
    %c0_36 = arith.constant 0 : index
    %c0_37 = arith.constant 0 : index
    %57 = vector.load %arg13[%c0_36, %c0_37] : memref<8x128xf32, #tpu.memory_space<vmem>>, vector<8x128xf32>
    tpu.vector_store %arg13[%c0_36, %c0_37], %56 {strides = array<i32>} : memref<8x128xf32, #tpu.memory_space<vmem>>, vector<8x128xf32>,
    return
  }
  func.func @transform_0(%arg0: i32) -> (i32, i32) {
    %c0_i32 = arith.constant 0 : i32
    %c0_i32_0 = arith.constant 0 : i32
    return %arg0, %c0_i32 : i32, i32
  }
  func.func @transform_1(%arg0: i32) -> (i32, i32) {
    %c0_i32 = arith.constant 0 : i32
    %c0_i32_0 = arith.constant 0 : i32
    return %arg0, %c0_i32 : i32, i32
  }
  func.func @transform_2(%arg0: i32) -> (i32, i32) {
    %c0_i32 = arith.constant 0 : i32
    %c0_i32_0 = arith.constant 0 : i32
    return %arg0, %c0_i32 : i32, i32
  }
  func.func @transform_3(%arg0: i32) -> (i32, i32) {
    %c0_i32 = arith.constant 0 : i32
    %c0_i32_0 = arith.constant 0 : i32
    return %arg0, %c0_i32 : i32, i32
  }
  func.func @transform_4(%arg0: i32) -> (i32, i32) {
    %c0_i32 = arith.constant 0 : i32
    %c0_i32_0 = arith.constant 0 : i32
    %c0_i32_1 = arith.constant 0 : i32
    return %c0_i32, %c0_i32_0 : i32, i32
  }
  func.func @transform_5(%arg0: i32) -> (i32, i32) {
    %c0_i32 = arith.constant 0 : i32
    %c0_i32_0 = arith.constant 0 : i32
    %c0_i32_1 = arith.constant 0 : i32
    return %c0_i32, %c0_i32_0 : i32, i32
  }
  func.func @transform_6(%arg0: i32) -> (i32, i32) {
    %c0_i32 = arith.constant 0 : i32
    %c0_i32_0 = arith.constant 0 : i32
    %c0_i32_1 = arith.constant 0 : i32
    return %c0_i32, %c0_i32_0 : i32, i32
  }
  func.func @transform_7(%arg0: i32) -> (i32, i32) {
    %c0_i32 = arith.constant 0 : i32
    %c0_i32_0 = arith.constant 0 : i32
    %c0_i32_1 = arith.constant 0 : i32
    return %c0_i32, %c0_i32_0 : i32, i32
  }
  func.func @transform_8(%arg0: i32) -> (i32, i32) {
    %c0_i32 = arith.constant 0 : i32
    %c0_i32_0 = arith.constant 0 : i32
    %c0_i32_1 = arith.constant 0 : i32
    return %c0_i32, %c0_i32_0 : i32, i32
  }
  func.func @transform_9(%arg0: i32) -> (i32, i32) {
    %c0_i32 = arith.constant 0 : i32
    %c0_i32_0 = arith.constant 0 : i32
    %c0_i32_1 = arith.constant 0 : i32
    return %c0_i32, %c0_i32_0 : i32, i32
  }
  func.func @transform_10(%arg0: i32) -> (i32, i32) {
    %c0_i32 = arith.constant 0 : i32
    %c0_i32_0 = arith.constant 0 : i32
    %c0_i32_1 = arith.constant 0 : i32
    return %c0_i32, %c0_i32_0 : i32, i32
  }
  func.func @transform_11(%arg0: i32) -> (i32, i32) {
    %c0_i32 = arith.constant 0 : i32
    %c0_i32_0 = arith.constant 0 : i32
    %c0_i32_1 = arith.constant 0 : i32
    return %c0_i32, %c0_i32_0 : i32, i32
  }
  func.func @transform_12(%arg0: i32) -> (i32, i32) {
    %c0_i32 = arith.constant 0 : i32
    %c0_i32_0 = arith.constant 0 : i32
    return %arg0, %c0_i32 : i32, i32
  }
}

</mosaic_0001>

<llo_original>
// kernel: tpu_custom_call.1
$region0: #{tpu_custom_call.1}
  #allocation0 [shape = 'u32[]', space=smem, size = 0x4, offset = 0x4, fixed_abs, tag = 'smem constant byte address 0x4 - core index']
  #allocation1 [shape = 'u32[72,128]{1,0:T(1,128)}', space=vmem, size = 0x9000, scoped, tag = 'internal scratch']
  %s0 = inlined_call_operand.hbm [shape: f32[8,16], index: 0, kind: input, shape index: {}]
  %s1 = inlined_call_operand.hbm [shape: f32[8,512], index: 1, kind: input, shape index: {}]
  %s2 = inlined_call_operand.hbm [shape: f32[8,256], index: 2, kind: input, shape index: {}]
  %s3 = inlined_call_operand.hbm [shape: f32[8,128], index: 3, kind: input, shape index: {}]
  %s4 = inlined_call_operand.hbm [shape: bf16[16,512], index: 4, kind: input, shape index: {}]
  %s5 = inlined_call_operand.vmem [shape: f32[1,512], index: 5, kind: input, shape index: {}]
  %s6 = inlined_call_operand.hbm [shape: bf16[512,256], index: 6, kind: input, shape index: {}]
  %s7 = inlined_call_operand.vmem [shape: f32[1,256], index: 7, kind: input, shape index: {}]
  %s8 = inlined_call_operand.hbm [shape: bf16[256,128], index: 8, kind: input, shape index: {}]
  %s9 = inlined_call_operand.vmem [shape: f32[1,128], index: 9, kind: input, shape index: {}]
  %s10 = inlined_call_operand.hbm [shape: bf16[128,128], index: 10, kind: input, shape index: {}]
  %s11 = inlined_call_operand.vmem [shape: f32[1,128], index: 11, kind: input, shape index: {}]
  %s12 = inlined_call_operand.hbm [shape: f32[8,128], index: 12, kind: output, shape index: {}]
  %s13 = sld [smem:[#allocation0]]
  $region90: #{tpu_custom_call.1} parent=0
    _
  %s15 = ssub.s32 1, %s13
  %s16 = scalar_select 0, %s15, %s13
  $region1: #{tpu_custom_call.1} parent=0
    #allocation2 [shape = 'u8[4096]{0}', space=vmem, size = 0x1000, scoped, tag = 'input window, operand 0, single buffered']
    #allocation3 [shape = 's32[1]{0}', space=sflag, size = 0x4, scoped, tag = 'scoped memory for tpu_custom_call.1']
    #allocation4 [shape = 's32[1]{0}', space=sflag, size = 0x4, scoped, tag = 'scoped memory for tpu_custom_call.1']
    #allocation5 [shape = 'u8[16384]{0}', space=vmem, size = 0x4000, scoped, tag = 'input window, operand 1, single buffered']
    #allocation6 [shape = 's32[1]{0}', space=sflag, size = 0x4, scoped, tag = 'scoped memory for tpu_custom_call.1']
    #allocation7 [shape = 'u8[8192]{0}', space=vmem, size = 0x2000, scoped, tag = 'input window, operand 2, single buffered']
    #allocation8 [shape = 'u8[4096]{0}', space=vmem, size = 0x1000, scoped, tag = 'input window, operand 3, single buffered']
    #allocation9 [shape = 's32[1]{0}', space=sflag, size = 0x4, scoped, tag = 'scoped memory for tpu_custom_call.1']
    #allocation10 [shape = 'u8[16384]{0}', space=vmem, size = 0x4000, scoped, tag = 'input window, operand 4, single buffered']
    #allocation11 [shape = 'u8[262144]{0}', space=vmem, size = 0x40000, scoped, tag = 'input window, operand 6, single buffered']
    #allocation12 [shape = 's32[1]{0}', space=sflag, size = 0x4, scoped, tag = 'scoped memory for tpu_custom_call.1']
    #allocation13 [shape = 'u8[65536]{0}', space=vmem, size = 0x10000, scoped, tag = 'input window, operand 8, single buffered']
    #allocation14 [shape = 'u8[32768]{0}', space=vmem, size = 0x8000, scoped, tag = 'input window, operand 10, single buffered']
    #allocation15 [shape = 's32[1]{0}', space=sflag, size = 0x4, scoped, tag = 'scoped memory for tpu_custom_call.1']
    #allocation16 [shape = 'u8[4096]{0}', space=vmem, size = 0x1000, scoped, tag = 'output window, operand 0, single buffered']
    %17 = vsyncpa [#allocation3], 0
    %18 = vsyncpa [#allocation6], 0
    %19 = vsyncpa [#allocation9], 0
    %20 = vsyncpa [#allocation12], 0
    %21 = vsyncpa [#allocation15], 0
    %22 = vsyncpa [#allocation4], 0
    // Predicated region
    $region2: #{tpu_custom_call.1} parent=1 // pred_check
      _
    $region3: #{tpu_custom_call.1} parent=1 // pred_check_branch
      %24 = sbr.rel (0) target = $region5
    $region4: #{tpu_custom_call.1} parent=1 // pred_region
      %26 = vsyncadd [#allocation3], 0
      %s28 = sshll.u32 %s0, 4
      %s29 = int_to_ptr.hbm [resolvable:$true] %s28
      %s30 = sshll.u32 [#allocation2], 4
      %s31 = int_to_ptr.vmem [resolvable:$true] %s30
      %33 = dma.hbm_to_vmem [thread:$0]  %s29, 128, %s31, [#allocation3]
    $region5: #{tpu_custom_call.1} parent=1 // pred_fallthru
      _
    // Predicated region
    $region6: #{tpu_custom_call.1} parent=1 // pred_check
      _
    $region7: #{tpu_custom_call.1} parent=1 // pred_check_branch
      %35 = sbr.rel (0) target = $region9
    $region8: #{tpu_custom_call.1} parent=1 // pred_region
      %37 = vsyncadd [#allocation6], 0
      %s39 = sshll.u32 %s1, 4
      %s40 = int_to_ptr.hbm [resolvable:$true] %s39
      %s41 = sshll.u32 [#allocation5], 4
      %s42 = int_to_ptr.vmem [resolvable:$true] %s41
      %44 = dma.hbm_to_vmem [thread:$0]  %s40, 512, %s42, [#allocation6]
    $region9: #{tpu_custom_call.1} parent=1 // pred_fallthru
      _
    // Predicated region
    $region10: #{tpu_custom_call.1} parent=1 // pred_check
      _
    $region11: #{tpu_custom_call.1} parent=1 // pred_check_branch
      %46 = sbr.rel (0) target = $region13
    $region12: #{tpu_custom_call.1} parent=1 // pred_region
      %48 = vsyncadd [#allocation6], 0
      %s50 = sshll.u32 %s2, 4
      %s51 = int_to_ptr.hbm [resolvable:$true] %s50
      %s52 = sshll.u32 [#allocation7], 4
      %s53 = int_to_ptr.vmem [resolvable:$true] %s52
      %55 = dma.hbm_to_vmem [thread:$0]  %s51, 256, %s53, [#allocation6]
    $region13: #{tpu_custom_call.1} parent=1 // pred_fallthru
      _
    // Predicated region
    $region14: #{tpu_custom_call.1} parent=1 // pred_check
      _
    $region15: #{tpu_custom_call.1} parent=1 // pred_check_branch
      %57 = sbr.rel (0) target = $region17
    $region16: #{tpu_custom_call.1} parent=1 // pred_region
      %59 = vsyncadd [#allocation9], 0
      %s61 = sshll.u32 %s3, 4
      %s62 = int_to_ptr.hbm [resolvable:$true] %s61
      %s63 = sshll.u32 [#allocation8], 4
      %s64 = int_to_ptr.vmem [resolvable:$true] %s63
      %66 = dma.hbm_to_vmem [thread:$0]  %s62, 128, %s64, [#allocation9]
    $region17: #{tpu_custom_call.1} parent=1 // pred_fallthru
      _
    // Predicated region
    $region18: #{tpu_custom_call.1} parent=1 // pred_check
      _
    $region19: #{tpu_custom_call.1} parent=1 // pred_check_branch
      %68 = sbr.rel (0) target = $region21
    $region20: #{tpu_custom_call.1} parent=1 // pred_region
      %70 = vsyncadd [#allocation9], 0
      %s71 = sshll.u32 %s4, 4
      %s72 = int_to_ptr.hbm [resolvable:$true] %s71
      %s73 = sshll.u32 [#allocation10], 4
      %s74 = int_to_ptr.vmem [resolvable:$true] %s73
      %79 = dma.hbm_to_vmem [thread:$0]  %s72, 512, %s74, [#allocation9], 256, 256, 16
    $region21: #{tpu_custom_call.1} parent=1 // pred_fallthru
      _
    // Predicated region
    $region22: #{tpu_custom_call.1} parent=1 // pred_check
      _
    $region23: #{tpu_custom_call.1} parent=1 // pred_check_branch
      %81 = sbr.rel (0) target = $region25
    $region24: #{tpu_custom_call.1} parent=1 // pred_region
      _
    $region25: #{tpu_custom_call.1} parent=1 // pred_fallthru
      _
    // Predicated region
    $region26: #{tpu_custom_call.1} parent=1 // pred_check
      _
    $region27: #{tpu_custom_call.1} parent=1 // pred_check_branch
      %83 = sbr.rel (0) target = $region29
    $region28: #{tpu_custom_call.1} parent=1 // pred_region
      %85 = vsyncadd [#allocation12], 0
      %s86 = sshll.u32 %s6, 4
      %s87 = int_to_ptr.hbm [resolvable:$true] %s86
      %s88 = sshll.u32 [#allocation11], 4
      %s89 = int_to_ptr.vmem [resolvable:$true] %s88
      %94 = dma.hbm_to_vmem [thread:$0]  %s87, 8192, %s89, [#allocation12], 128, 128, 8
    $region29: #{tpu_custom_call.1} parent=1 // pred_fallthru
      _
    // Predicated region
    $region30: #{tpu_custom_call.1} parent=1 // pred_check
      _
    $region31: #{tpu_custom_call.1} parent=1 // pred_check_branch
      %96 = sbr.rel (0) target = $region33
    $region32: #{tpu_custom_call.1} parent=1 // pred_region
      _
    $region33: #{tpu_custom_call.1} parent=1 // pred_fallthru
      _
    // Predicated region
    $region34: #{tpu_custom_call.1} parent=1 // pred_check
      _
    $region35: #{tpu_custom_call.1} parent=1 // pred_check_branch
      %98 = sbr.rel (0) target = $region37
    $region36: #{tpu_custom_call.1} parent=1 // pred_region
      %100 = vsyncadd [#allocation12], 0
      %s101 = sshll.u32 %s8, 4
      %s102 = int_to_ptr.hbm [resolvable:$true] %s101
      %s103 = sshll.u32 [#allocation13], 4
      %s104 = int_to_ptr.vmem [resolvable:$true] %s103
      %109 = dma.hbm_to_vmem [thread:$0]  %s102, 2048, %s104, [#allocation12], 64, 64, 4
    $region37: #{tpu_custom_call.1} parent=1 // pred_fallthru
      _
    // Predicated region
    $region38: #{tpu_custom_call.1} parent=1 // pred_check
      _
    $region39: #{tpu_custom_call.1} parent=1 // pred_check_branch
      %111 = sbr.rel (0) target = $region41
    $region40: #{tpu_custom_call.1} parent=1 // pred_region
      _
    $region41: #{tpu_custom_call.1} parent=1 // pred_fallthru
      _
    // Predicated region
    $region42: #{tpu_custom_call.1} parent=1 // pred_check
      _
    $region43: #{tpu_custom_call.1} parent=1 // pred_check_branch
      %113 = sbr.rel (0) target = $region45
    $region44: #{tpu_custom_call.1} parent=1 // pred_region
      %115 = vsyncadd [#allocation15], 0
      %s116 = sshll.u32 %s10, 4
      %s117 = int_to_ptr.hbm [resolvable:$true] %s116
      %s118 = sshll.u32 [#allocation14], 4
      %s119 = int_to_ptr.vmem [resolvable:$true] %s118
      %124 = dma.hbm_to_vmem [thread:$0]  %s117, 1024, %s119, [#allocation15], 64, 64, 4
    $region45: #{tpu_custom_call.1} parent=1 // pred_fallthru
      _
    // Predicated region
    $region46: #{tpu_custom_call.1} parent=1 // pred_check
      _
    $region47: #{tpu_custom_call.1} parent=1 // pred_check_branch
      %126 = sbr.rel (0) target = $region49
    $region48: #{tpu_custom_call.1} parent=1 // pred_region
      _
    $region49: #{tpu_custom_call.1} parent=1 // pred_fallthru
      _
    // Predicated region
    $region50: #{tpu_custom_call.1} parent=1 // pred_check
      _
    $region51: #{tpu_custom_call.1} parent=1 // pred_check_branch
      %128 = sbr.rel (0) target = $region53
    $region52: #{tpu_custom_call.1} parent=1 // pred_region
      %130 = dma.done [#allocation3], 128
    $region53: #{tpu_custom_call.1} parent=1 // pred_fallthru
      _
    // Predicated region
    $region54: #{tpu_custom_call.1} parent=1 // pred_check
      _
    $region55: #{tpu_custom_call.1} parent=1 // pred_check_branch
      %132 = sbr.rel (0) target = $region57
    $region56: #{tpu_custom_call.1} parent=1 // pred_region
      %134 = dma.done [#allocation6], 512
    $region57: #{tpu_custom_call.1} parent=1 // pred_fallthru
      _
    // Predicated region
    $region58: #{tpu_custom_call.1} parent=1 // pred_check
      _
    $region59: #{tpu_custom_call.1} parent=1 // pred_check_branch
      %136 = sbr.rel (0) target = $region61
    $region60: #{tpu_custom_call.1} parent=1 // pred_region
      %138 = dma.done [#allocation6], 256
    $region61: #{tpu_custom_call.1} parent=1 // pred_fallthru
      _
    // Predicated region
    $region62: #{tpu_custom_call.1} parent=1 // pred_check
      _
    $region63: #{tpu_custom_call.1} parent=1 // pred_check_branch
      %140 = sbr.rel (0) target = $region65
    $region64: #{tpu_custom_call.1} parent=1 // pred_region
      %142 = dma.done [#allocation9], 128
    $region65: #{tpu_custom_call.1} parent=1 // pred_fallthru
      _
    // Predicated region
    $region66: #{tpu_custom_call.1} parent=1 // pred_check
      _
    $region67: #{tpu_custom_call.1} parent=1 // pred_check_branch
      %144 = sbr.rel (0) target = $region69
    $region68: #{tpu_custom_call.1} parent=1 // pred_region
      %146 = dma.done [#allocation9], 512
    $region69: #{tpu_custom_call.1} parent=1 // pred_fallthru
      _
    // Predicated region
    $region70: #{tpu_custom_call.1} parent=1 // pred_check
      _
    $region71: #{tpu_custom_call.1} parent=1 // pred_check_branch
      %148 = sbr.rel (0) target = $region73
    $region72: #{tpu_custom_call.1} parent=1 // pred_region
      %150 = dma.done [#allocation12], 8192
    $region73: #{tpu_custom_call.1} parent=1 // pred_fallthru
      _
    // Predicated region
    $region74: #{tpu_custom_call.1} parent=1 // pred_check
      _
    $region75: #{tpu_custom_call.1} parent=1 // pred_check_branch
      %152 = sbr.rel (0) target = $region77
    $region76: #{tpu_custom_call.1} parent=1 // pred_region
      %154 = dma.done [#allocation12], 2048
    $region77: #{tpu_custom_call.1} parent=1 // pred_fallthru
      _
    // Predicated region
    $region78: #{tpu_custom_call.1} parent=1 // pred_check
      _
    $region79: #{tpu_custom_call.1} parent=1 // pred_check_branch
      %156 = sbr.rel (0) target = $region81
    $region80: #{tpu_custom_call.1} parent=1 // pred_region
      %158 = dma.done [#allocation15], 1024
    $region81: #{tpu_custom_call.1} parent=1 // pred_fallthru
      _
    %v160 = vld [vmem:[#allocation2] sm:$0xff]
    %v161 = vpack.c.bf16 %v160, %v160
    %v162 = vld [vmem:[#allocation10] sm:$0xff]
    %v163 = vld [vmem:[#allocation10 + $0x8] sm:$0xff]
    %v164 = vld [vmem:[#allocation10 + $0x10] sm:$0xff]
    %v165 = vld [vmem:[#allocation10 + $0x18] sm:$0xff]
    %v166 = vld [vmem:[%s5] sm:$0xf]
    %v168 = vperm.slane %v166, 0
    %v169 = vperm.slane %v166, 1
    %v170 = vperm.slane %v166, 2
    %v171 = vperm.slane %v166, 3
    %v180 = vunpack.c.l.b16 %v162
    %v181 = vunpack.c.h.b16 %v162
    %v182 = vunpack.c.l.b16 %v163
    %v183 = vunpack.c.h.b16 %v163
    %v184 = vunpack.c.l.b16 %v164
    %v185 = vunpack.c.h.b16 %v164
    %v186 = vunpack.c.l.b16 %v165
    %v187 = vunpack.c.h.b16 %v165
    %v188 = vpack.c.b16 %v184, %v180
    %v189 = vpack.c.b16 %v185, %v181
    %v190 = vpack.c.b16 %v186, %v182
    %v191 = vpack.c.b16 %v187, %v183
    %vm196 = vcmask 130048
    %v198 = vsel %vm196, %v161, 0
    %200 = vmatpush.bf16.msra.mxu0 0
    %201 = vmatpush.bf16.msra.mxu0 0
    %202 = vmatpush.bf16.msra.mxu0 0
    %203 = vmatpush.bf16.msra.mxu0 0
    %204 = vmatpush.bf16.msra.mxu0 0
    %205 = vmatpush.bf16.msra.mxu0 0
    %206 = vmatpush.bf16.msra.mxu0 0
    %207 = vmatpush.bf16.msra.mxu0 %v188
    %208 = vmatmul.bf16.gmra.mxu0 %v198
    %v209 = vpop.f32.mrf.mxu0
    %v210 = vadd.f32 %v168, %v209
    %v211 = vpop.f32.mrf.mxu0
    %212 = vdwg.mxu0
    %213 = vmatpush.bf16.msra.mxu0 0
    %214 = vmatpush.bf16.msra.mxu0 0
    %215 = vmatpush.bf16.msra.mxu0 0
    %216 = vmatpush.bf16.msra.mxu0 0
    %217 = vmatpush.bf16.msra.mxu0 0
    %218 = vmatpush.bf16.msra.mxu0 0
    %219 = vmatpush.bf16.msra.mxu0 0
    %220 = vmatpush.bf16.msra.mxu0 %v189
    %221 = vmatmul.bf16.gmra.mxu0 %v198
    %v222 = vpop.f32.mrf.mxu0
    %v223 = vadd.f32 %v169, %v222
    %v224 = vpop.f32.mrf.mxu0
    %225 = vdwg.mxu0
    %226 = vmatpush.bf16.msra.mxu0 0
    %227 = vmatpush.bf16.msra.mxu0 0
    %228 = vmatpush.bf16.msra.mxu0 0
    %229 = vmatpush.bf16.msra.mxu0 0
    %230 = vmatpush.bf16.msra.mxu0 0
    %231 = vmatpush.bf16.msra.mxu0 0
    %232 = vmatpush.bf16.msra.mxu0 0
    %233 = vmatpush.bf16.msra.mxu0 %v190
    %234 = vmatmul.bf16.gmra.mxu0 %v198
    %v235 = vpop.f32.mrf.mxu0
    %v236 = vadd.f32 %v170, %v235
    %v237 = vpop.f32.mrf.mxu0
    %238 = vdwg.mxu0
    %239 = vmatpush.bf16.msra.mxu0 0
    %240 = vmatpush.bf16.msra.mxu0 0
    %241 = vmatpush.bf16.msra.mxu0 0
    %242 = vmatpush.bf16.msra.mxu0 0
    %243 = vmatpush.bf16.msra.mxu0 0
    %244 = vmatpush.bf16.msra.mxu0 0
    %245 = vmatpush.bf16.msra.mxu0 0
    %246 = vmatpush.bf16.msra.mxu0 %v191
    %247 = vmatmul.bf16.gmra.mxu0 %v198
    %v248 = vpop.f32.mrf.mxu0
    %v249 = vadd.f32 %v171, %v248
    %v250 = vpop.f32.mrf.mxu0
    %251 = vdwg.mxu0
    %v252 = vmax.f32 %v210, 0.0
    %v253 = vmax.f32 %v223, 0.0
    %v254 = vmax.f32 %v236, 0.0
    %v255 = vmax.f32 %v249, 0.0
    %v256 = vld [vmem:[#allocation5] sm:$0xff]
    %v257 = vld [vmem:[#allocation5 + $0x8] sm:$0xff]
    %v258 = vld [vmem:[#allocation5 + $0x10] sm:$0xff]
    %v259 = vld [vmem:[#allocation5 + $0x18] sm:$0xff]
    %v260 = vmul.f32 %v252, %v256
    %v261 = vmul.f32 %v253, %v257
    %v262 = vmul.f32 %v254, %v258
    %v263 = vmul.f32 %v255, %v259
    %v264 = vpack.c.bf16 %v260, %v260
    %v265 = vpack.c.bf16 %v261, %v261
    %v266 = vpack.c.bf16 %v262, %v262
    %v267 = vpack.c.bf16 %v263, %v263
    %v268 = vld [vmem:[#allocation11] sm:$0xff]
    %v269 = vld [vmem:[#allocation11 + $0x8] sm:$0xff]
    %v270 = vld [vmem:[#allocation11 + $0x10] sm:$0xff]
    %v271 = vld [vmem:[#allocation11 + $0x18] sm:$0xff]
    %v272 = vld [vmem:[#allocation11 + $0x20] sm:$0xff]
    %v273 = vld [vmem:[#allocation11 + $0x28] sm:$0xff]
    %v274 = vld [vmem:[#allocation11 + $0x30] sm:$0xff]
    %v275 = vld [vmem:[#allocation11 + $0x38] sm:$0xff]
    %v276 = vld [vmem:[#allocation11 + $0x40] sm:$0xff]
    %v277 = vld [vmem:[#allocation11 + $0x48] sm:$0xff]
    %v278 = vld [vmem:[#allocation11 + $0x50] sm:$0xff]
    %v279 = vld [vmem:[#allocation11 + $0x58] sm:$0xff]
    %v280 = vld [vmem:[#allocation11 + $0x60] sm:$0xff]
    %v281 = vld [vmem:[#allocation11 + $0x68] sm:$0xff]
    %v282 = vld [vmem:[#allocation11 + $0x70] sm:$0xff]
    %v283 = vld [vmem:[#allocation11 + $0x78] sm:$0xff]
    %v284 = vld [vmem:[#allocation11 + $0x80] sm:$0xff]
    %v285 = vld [vmem:[#allocation11 + $0x88] sm:$0xff]
    %v286 = vld [vmem:[#allocation11 + $0x90] sm:$0xff]
    %v287 = vld [vmem:[#allocation11 + $0x98] sm:$0xff]
    %v288 = vld [vmem:[#allocation11 + $0xa0] sm:$0xff]
    %v289 = vld [vmem:[#allocation11 + $0xa8] sm:$0xff]
    %v290 = vld [vmem:[#allocation11 + $0xb0] sm:$0xff]
    %v291 = vld [vmem:[#allocation11 + $0xb8] sm:$0xff]
    %v292 = vld [vmem:[#allocation11 + $0xc0] sm:$0xff]
    %v293 = vld [vmem:[#allocation11 + $0xc8] sm:$0xff]
    %v294 = vld [vmem:[#allocation11 + $0xd0] sm:$0xff]
    %v295 = vld [vmem:[#allocation11 + $0xd8] sm:$0xff]
    %v296 = vld [vmem:[#allocation11 + $0xe0] sm:$0xff]
    %v297 = vld [vmem:[#allocation11 + $0xe8] sm:$0xff]
    %v298 = vld [vmem:[#allocation11 + $0xf0] sm:$0xff]
    %v299 = vld [vmem:[#allocation11 + $0xf8] sm:$0xff]
    %v300 = vld [vmem:[#allocation11 + $0x100] sm:$0xff]
    %v301 = vld [vmem:[#allocation11 + $0x108] sm:$0xff]
    %v302 = vld [vmem:[#allocation11 + $0x110] sm:$0xff]
    %v303 = vld [vmem:[#allocation11 + $0x118] sm:$0xff]
    %v304 = vld [vmem:[#allocation11 + $0x120] sm:$0xff]
    %v305 = vld [vmem:[#allocation11 + $0x128] sm:$0xff]
    %v306 = vld [vmem:[#allocation11 + $0x130] sm:$0xff]
    %v307 = vld [vmem:[#allocation11 + $0x138] sm:$0xff]
    %v308 = vld [vmem:[#allocation11 + $0x140] sm:$0xff]
    %v309 = vld [vmem:[#allocation11 + $0x148] sm:$0xff]
    %v310 = vld [vmem:[#allocation11 + $0x150] sm:$0xff]
    %v311 = vld [vmem:[#allocation11 + $0x158] sm:$0xff]
    %v312 = vld [vmem:[#allocation11 + $0x160] sm:$0xff]
    %v313 = vld [vmem:[#allocation11 + $0x168] sm:$0xff]
    %v314 = vld [vmem:[#allocation11 + $0x170] sm:$0xff]
    %v315 = vld [vmem:[#allocation11 + $0x178] sm:$0xff]
    %v316 = vld [vmem:[#allocation11 + $0x180] sm:$0xff]
    %v317 = vld [vmem:[#allocation11 + $0x188] sm:$0xff]
    %v318 = vld [vmem:[#allocation11 + $0x190] sm:$0xff]
    %v319 = vld [vmem:[#allocation11 + $0x198] sm:$0xff]
    %v320 = vld [vmem:[#allocation11 + $0x1a0] sm:$0xff]
    %v321 = vld [vmem:[#allocation11 + $0x1a8] sm:$0xff]
    %v322 = vld [vmem:[#allocation11 + $0x1b0] sm:$0xff]
    %v323 = vld [vmem:[#allocation11 + $0x1b8] sm:$0xff]
    %v324 = vld [vmem:[#allocation11 + $0x1c0] sm:$0xff]
    %v325 = vld [vmem:[#allocation11 + $0x1c8] sm:$0xff]
    %v326 = vld [vmem:[#allocation11 + $0x1d0] sm:$0xff]
    %v327 = vld [vmem:[#allocation11 + $0x1d8] sm:$0xff]
    %v328 = vld [vmem:[#allocation11 + $0x1e0] sm:$0xff]
    %v329 = vld [vmem:[#allocation11 + $0x1e8] sm:$0xff]
    %v330 = vld [vmem:[#allocation11 + $0x1f0] sm:$0xff]
    %v331 = vld [vmem:[#allocation11 + $0x1f8] sm:$0xff]
    %v332 = vld [vmem:[%s7] sm:$0x3]
    %v334 = vperm.slane %v332, 0
    %v335 = vperm.slane %v332, 1
    %v402 = vunpack.c.l.b16 %v268
    %v403 = vunpack.c.h.b16 %v268
    %v404 = vunpack.c.l.b16 %v269
    %v405 = vunpack.c.h.b16 %v269
    %v406 = vunpack.c.l.b16 %v270
    %v407 = vunpack.c.h.b16 %v270
    %v408 = vunpack.c.l.b16 %v271
    %v409 = vunpack.c.h.b16 %v271
    %v410 = vunpack.c.l.b16 %v272
    %v411 = vunpack.c.h.b16 %v272
    %v412 = vunpack.c.l.b16 %v273
    %v413 = vunpack.c.h.b16 %v273
    %v414 = vunpack.c.l.b16 %v274
    %v415 = vunpack.c.h.b16 %v274
    %v416 = vunpack.c.l.b16 %v275
    %v417 = vunpack.c.h.b16 %v275
    %v418 = vunpack.c.l.b16 %v276
    %v419 = vunpack.c.h.b16 %v276
    %v420 = vunpack.c.l.b16 %v277
    %v421 = vunpack.c.h.b16 %v277
    %v422 = vunpack.c.l.b16 %v278
    %v423 = vunpack.c.h.b16 %v278
    %v424 = vunpack.c.l.b16 %v279
    %v425 = vunpack.c.h.b16 %v279
    %v426 = vunpack.c.l.b16 %v280
    %v427 = vunpack.c.h.b16 %v280
    %v428 = vunpack.c.l.b16 %v281
    %v429 = vunpack.c.h.b16 %v281
    %v430 = vunpack.c.l.b16 %v282
    %v431 = vunpack.c.h.b16 %v282
    %v432 = vunpack.c.l.b16 %v283
    %v433 = vunpack.c.h.b16 %v283
    %v434 = vunpack.c.l.b16 %v284
    %v435 = vunpack.c.h.b16 %v284
    %v436 = vunpack.c.l.b16 %v285
    %v437 = vunpack.c.h.b16 %v285
    %v438 = vunpack.c.l.b16 %v286
    %v439 = vunpack.c.h.b16 %v286
    %v440 = vunpack.c.l.b16 %v287
    %v441 = vunpack.c.h.b16 %v287
    %v442 = vunpack.c.l.b16 %v288
    %v443 = vunpack.c.h.b16 %v288
    %v444 = vunpack.c.l.b16 %v289
    %v445 = vunpack.c.h.b16 %v289
    %v446 = vunpack.c.l.b16 %v290
    %v447 = vunpack.c.h.b16 %v290
    %v448 = vunpack.c.l.b16 %v291
    %v449 = vunpack.c.h.b16 %v291
    %v450 = vunpack.c.l.b16 %v292
    %v451 = vunpack.c.h.b16 %v292
    %v452 = vunpack.c.l.b16 %v293
    %v453 = vunpack.c.h.b16 %v293
    %v454 = vunpack.c.l.b16 %v294
    %v455 = vunpack.c.h.b16 %v294
    %v456 = vunpack.c.l.b16 %v295
    %v457 = vunpack.c.h.b16 %v295
    %v458 = vunpack.c.l.b16 %v296
    %v459 = vunpack.c.h.b16 %v296
    %v460 = vunpack.c.l.b16 %v297
    %v461 = vunpack.c.h.b16 %v297
    %v462 = vunpack.c.l.b16 %v298
    %v463 = vunpack.c.h.b16 %v298
    %v464 = vunpack.c.l.b16 %v299
    %v465 = vunpack.c.h.b16 %v299
    %v466 = vunpack.c.l.b16 %v300
    %v467 = vunpack.c.h.b16 %v300
    %v468 = vunpack.c.l.b16 %v301
    %v469 = vunpack.c.h.b16 %v301
    %v470 = vunpack.c.l.b16 %v302
    %v471 = vunpack.c.h.b16 %v302
    %v472 = vunpack.c.l.b16 %v303
    %v473 = vunpack.c.h.b16 %v303
    %v474 = vunpack.c.l.b16 %v304
    %v475 = vunpack.c.h.b16 %v304
    %v476 = vunpack.c.l.b16 %v305
    %v477 = vunpack.c.h.b16 %v305
    %v478 = vunpack.c.l.b16 %v306
    %v479 = vunpack.c.h.b16 %v306
    %v480 = vunpack.c.l.b16 %v307
    %v481 = vunpack.c.h.b16 %v307
    %v482 = vunpack.c.l.b16 %v308
    %v483 = vunpack.c.h.b16 %v308
    %v484 = vunpack.c.l.b16 %v309
    %v485 = vunpack.c.h.b16 %v309
    %v486 = vunpack.c.l.b16 %v310
    %v487 = vunpack.c.h.b16 %v310
    %v488 = vunpack.c.l.b16 %v311
    %v489 = vunpack.c.h.b16 %v311
    %v490 = vunpack.c.l.b16 %v312
    %v491 = vunpack.c.h.b16 %v312
    %v492 = vunpack.c.l.b16 %v313
    %v493 = vunpack.c.h.b16 %v313
    %v494 = vunpack.c.l.b16 %v314
    %v495 = vunpack.c.h.b16 %v314
    %v496 = vunpack.c.l.b16 %v315
    %v497 = vunpack.c.h.b16 %v315
    %v498 = vunpack.c.l.b16 %v316
    %v499 = vunpack.c.h.b16 %v316
    %v500 = vunpack.c.l.b16 %v317
    %v501 = vunpack.c.h.b16 %v317
    %v502 = vunpack.c.l.b16 %v318
    %v503 = vunpack.c.h.b16 %v318
    %v504 = vunpack.c.l.b16 %v319
    %v505 = vunpack.c.h.b16 %v319
    %v506 = vunpack.c.l.b16 %v320
    %v507 = vunpack.c.h.b16 %v320
    %v508 = vunpack.c.l.b16 %v321
    %v509 = vunpack.c.h.b16 %v321
    %v510 = vunpack.c.l.b16 %v322
    %v511 = vunpack.c.h.b16 %v322
    %v512 = vunpack.c.l.b16 %v323
    %v513 = vunpack.c.h.b16 %v323
    %v514 = vunpack.c.l.b16 %v324
    %v515 = vunpack.c.h.b16 %v324
    %v516 = vunpack.c.l.b16 %v325
    %v517 = vunpack.c.h.b16 %v325
    %v518 = vunpack.c.l.b16 %v326
    %v519 = vunpack.c.h.b16 %v326
    %v520 = vunpack.c.l.b16 %v327
    %v521 = vunpack.c.h.b16 %v327
    %v522 = vunpack.c.l.b16 %v328
    %v523 = vunpack.c.h.b16 %v328
    %v524 = vunpack.c.l.b16 %v329
    %v525 = vunpack.c.h.b16 %v329
    %v526 = vunpack.c.l.b16 %v330
    %v527 = vunpack.c.h.b16 %v330
    %v528 = vunpack.c.l.b16 %v331
    %v529 = vunpack.c.h.b16 %v331
    %v530 = vpack.c.b16 %v404, %v402
    %v531 = vpack.c.b16 %v405, %v403
    %v532 = vpack.c.b16 %v408, %v406
    %v533 = vpack.c.b16 %v409, %v407
    %v534 = vpack.c.b16 %v412, %v410
    %v535 = vpack.c.b16 %v413, %v411
    %v536 = vpack.c.b16 %v416, %v414
    %v537 = vpack.c.b16 %v417, %v415
    %v538 = vpack.c.b16 %v420, %v418
    %v539 = vpack.c.b16 %v421, %v419
    %v540 = vpack.c.b16 %v424, %v422
    %v541 = vpack.c.b16 %v425, %v423
    %v542 = vpack.c.b16 %v428, %v426
    %v543 = vpack.c.b16 %v429, %v427
    %v544 = vpack.c.b16 %v432, %v430
    %v545 = vpack.c.b16 %v433, %v431
    %v546 = vpack.c.b16 %v436, %v434
    %v547 = vpack.c.b16 %v437, %v435
    %v548 = vpack.c.b16 %v440, %v438
    %v549 = vpack.c.b16 %v441, %v439
    %v550 = vpack.c.b16 %v444, %v442
    %v551 = vpack.c.b16 %v445, %v443
    %v552 = vpack.c.b16 %v448, %v446
    %v553 = vpack.c.b16 %v449, %v447
    %v554 = vpack.c.b16 %v452, %v450
    %v555 = vpack.c.b16 %v453, %v451
    %v556 = vpack.c.b16 %v456, %v454
    %v557 = vpack.c.b16 %v457, %v455
    %v558 = vpack.c.b16 %v460, %v458
    %v559 = vpack.c.b16 %v461, %v459
    %v560 = vpack.c.b16 %v464, %v462
    %v561 = vpack.c.b16 %v465, %v463
    %v562 = vpack.c.b16 %v468, %v466
    %v563 = vpack.c.b16 %v469, %v467
    %v564 = vpack.c.b16 %v472, %v470
    %v565 = vpack.c.b16 %v473, %v471
    %v566 = vpack.c.b16 %v476, %v474
    %v567 = vpack.c.b16 %v477, %v475
    %v568 = vpack.c.b16 %v480, %v478
    %v569 = vpack.c.b16 %v481, %v479
    %v570 = vpack.c.b16 %v484, %v482
    %v571 = vpack.c.b16 %v485, %v483
    %v572 = vpack.c.b16 %v488, %v486
    %v573 = vpack.c.b16 %v489, %v487
    %v574 = vpack.c.b16 %v492, %v490
    %v575 = vpack.c.b16 %v493, %v491
    %v576 = vpack.c.b16 %v496, %v494
    %v577 = vpack.c.b16 %v497, %v495
    %v578 = vpack.c.b16 %v500, %v498
    %v579 = vpack.c.b16 %v501, %v499
    %v580 = vpack.c.b16 %v504, %v502
    %v581 = vpack.c.b16 %v505, %v503
    %v582 = vpack.c.b16 %v508, %v506
    %v583 = vpack.c.b16 %v509, %v507
    %v584 = vpack.c.b16 %v512, %v510
    %v585 = vpack.c.b16 %v513, %v511
    %v586 = vpack.c.b16 %v516, %v514
    %v587 = vpack.c.b16 %v517, %v515
    %v588 = vpack.c.b16 %v520, %v518
    %v589 = vpack.c.b16 %v521, %v519
    %v590 = vpack.c.b16 %v524, %v522
    %v591 = vpack.c.b16 %v525, %v523
    %v592 = vpack.c.b16 %v528, %v526
    %v593 = vpack.c.b16 %v529, %v527
    %658 = vmatpush.bf16.msra.mxu0 %v544
    %659 = vmatpush.bf16.msra.mxu0 %v542
    %660 = vmatpush.bf16.msra.mxu0 %v540
    %661 = vmatpush.bf16.msra.mxu0 %v538
    %662 = vmatpush.bf16.msra.mxu0 %v536
    %663 = vmatpush.bf16.msra.mxu0 %v534
    %664 = vmatpush.bf16.msra.mxu0 %v532
    %665 = vmatpush.bf16.msra.mxu0 %v530
    %666 = vmatmul.bf16.gmra.mxu0 %v264
    %v667 = vpop.f32.mrf.mxu0
    %v668 = vadd.f32 %v334, %v667
    %v669 = vpop.f32.mrf.mxu0
    %670 = vdwg.mxu0
    %671 = vmatpush.bf16.msra.mxu0 %v560
    %672 = vmatpush.bf16.msra.mxu0 %v558
    %673 = vmatpush.bf16.msra.mxu0 %v556
    %674 = vmatpush.bf16.msra.mxu0 %v554
    %675 = vmatpush.bf16.msra.mxu0 %v552
    %676 = vmatpush.bf16.msra.mxu0 %v550
    %677 = vmatpush.bf16.msra.mxu0 %v548
    %678 = vmatpush.bf16.msra.mxu0 %v546
    %679 = vmatmul.bf16.gmra.mxu0 %v265
    %v680 = vpop.f32.mrf.mxu0
    %v681 = vadd.f32 %v668, %v680
    %v682 = vpop.f32.mrf.mxu0
    %683 = vdwg.mxu0
    %684 = vmatpush.bf16.msra.mxu0 %v576
    %685 = vmatpush.bf16.msra.mxu0 %v574
    %686 = vmatpush.bf16.msra.mxu0 %v572
    %687 = vmatpush.bf16.msra.mxu0 %v570
    %688 = vmatpush.bf16.msra.mxu0 %v568
    %689 = vmatpush.bf16.msra.mxu0 %v566
    %690 = vmatpush.bf16.msra.mxu0 %v564
    %691 = vmatpush.bf16.msra.mxu0 %v562
    %692 = vmatmul.bf16.gmra.mxu0 %v266
    %v693 = vpop.f32.mrf.mxu0
    %v694 = vadd.f32 %v681, %v693
    %v695 = vpop.f32.mrf.mxu0
    %696 = vdwg.mxu0
    %697 = vmatpush.bf16.msra.mxu0 %v592
    %698 = vmatpush.bf16.msra.mxu0 %v590
    %699 = vmatpush.bf16.msra.mxu0 %v588
    %700 = vmatpush.bf16.msra.mxu0 %v586
    %701 = vmatpush.bf16.msra.mxu0 %v584
    %702 = vmatpush.bf16.msra.mxu0 %v582
    %703 = vmatpush.bf16.msra.mxu0 %v580
    %704 = vmatpush.bf16.msra.mxu0 %v578
    %705 = vmatmul.bf16.gmra.mxu0 %v267
    %v706 = vpop.f32.mrf.mxu0
    %v707 = vadd.f32 %v694, %v706
    %v708 = vpop.f32.mrf.mxu0
    %709 = vdwg.mxu0
    %710 = vmatpush.bf16.msra.mxu0 %v545
    %711 = vmatpush.bf16.msra.mxu0 %v543
    %712 = vmatpush.bf16.msra.mxu0 %v541
    %713 = vmatpush.bf16.msra.mxu0 %v539
    %714 = vmatpush.bf16.msra.mxu0 %v537
    %715 = vmatpush.bf16.msra.mxu0 %v535
    %716 = vmatpush.bf16.msra.mxu0 %v533
    %717 = vmatpush.bf16.msra.mxu0 %v531
    %718 = vmatmul.bf16.gmra.mxu0 %v264
    %v719 = vpop.f32.mrf.mxu0
    %v720 = vadd.f32 %v335, %v719
    %v721 = vpop.f32.mrf.mxu0
    %722 = vdwg.mxu0
    %723 = vmatpush.bf16.msra.mxu0 %v561
    %724 = vmatpush.bf16.msra.mxu0 %v559
    %725 = vmatpush.bf16.msra.mxu0 %v557
    %726 = vmatpush.bf16.msra.mxu0 %v555
    %727 = vmatpush.bf16.msra.mxu0 %v553
    %728 = vmatpush.bf16.msra.mxu0 %v551
    %729 = vmatpush.bf16.msra.mxu0 %v549
    %730 = vmatpush.bf16.msra.mxu0 %v547
    %731 = vmatmul.bf16.gmra.mxu0 %v265
    %v732 = vpop.f32.mrf.mxu0
    %v733 = vadd.f32 %v720, %v732
    %v734 = vpop.f32.mrf.mxu0
    %735 = vdwg.mxu0
    %736 = vmatpush.bf16.msra.mxu0 %v577
    %737 = vmatpush.bf16.msra.mxu0 %v575
    %738 = vmatpush.bf16.msra.mxu0 %v573
    %739 = vmatpush.bf16.msra.mxu0 %v571
    %740 = vmatpush.bf16.msra.mxu0 %v569
    %741 = vmatpush.bf16.msra.mxu0 %v567
    %742 = vmatpush.bf16.msra.mxu0 %v565
    %743 = vmatpush.bf16.msra.mxu0 %v563
    %744 = vmatmul.bf16.gmra.mxu0 %v266
    %v745 = vpop.f32.mrf.mxu0
    %v746 = vadd.f32 %v733, %v745
    %v747 = vpop.f32.mrf.mxu0
    %748 = vdwg.mxu0
    %749 = vmatpush.bf16.msra.mxu0 %v593
    %750 = vmatpush.bf16.msra.mxu0 %v591
    %751 = vmatpush.bf16.msra.mxu0 %v589
    %752 = vmatpush.bf16.msra.mxu0 %v587
    %753 = vmatpush.bf16.msra.mxu0 %v585
    %754 = vmatpush.bf16.msra.mxu0 %v583
    %755 = vmatpush.bf16.msra.mxu0 %v581
    %756 = vmatpush.bf16.msra.mxu0 %v579
    %757 = vmatmul.bf16.gmra.mxu0 %v267
    %v758 = vpop.f32.mrf.mxu0
    %v759 = vadd.f32 %v746, %v758
    %v760 = vpop.f32.mrf.mxu0
    %761 = vdwg.mxu0
    %v762 = vmax.f32 %v707, 0.0
    %v763 = vmax.f32 %v759, 0.0
    %v764 = vld [vmem:[#allocation7] sm:$0xff]
    %v765 = vld [vmem:[#allocation7 + $0x8] sm:$0xff]
    %v766 = vmul.f32 %v762, %v764
    %v767 = vmul.f32 %v763, %v765
    %v768 = vpack.c.bf16 %v766, %v766
    %v769 = vpack.c.bf16 %v767, %v767
    %v770 = vld [vmem:[#allocation13] sm:$0xf]
    %v771 = vld [vmem:[#allocation13 + $0x4] sm:$0xf]
    %v772 = vld [vmem:[#allocation13 + $0x8] sm:$0xf]
    %v773 = vld [vmem:[#allocation13 + $0xc] sm:$0xf]
    %v774 = vld [vmem:[#allocation13 + $0x10] sm:$0xf]
    %v775 = vld [vmem:[#allocation13 + $0x14] sm:$0xf]
    %v776 = vld [vmem:[#allocation13 + $0x18] sm:$0xf]
    %v777 = vld [vmem:[#allocation13 + $0x1c] sm:$0xf]
    %v778 = vld [vmem:[#allocation13 + $0x20] sm:$0xf]
    %v779 = vld [vmem:[#allocation13 + $0x24] sm:$0xf]
    %v780 = vld [vmem:[#allocation13 + $0x28] sm:$0xf]
    %v781 = vld [vmem:[#allocation13 + $0x2c] sm:$0xf]
    %v782 = vld [vmem:[#allocation13 + $0x30] sm:$0xf]
    %v783 = vld [vmem:[#allocation13 + $0x34] sm:$0xf]
    %v784 = vld [vmem:[#allocation13 + $0x38] sm:$0xf]
    %v785 = vld [vmem:[#allocation13 + $0x3c] sm:$0xf]
    %v786 = vld [vmem:[#allocation13 + $0x40] sm:$0xf]
    %v787 = vld [vmem:[#allocation13 + $0x44] sm:$0xf]
    %v788 = vld [vmem:[#allocation13 + $0x48] sm:$0xf]
    %v789 = vld [vmem:[#allocation13 + $0x4c] sm:$0xf]
    %v790 = vld [vmem:[#allocation13 + $0x50] sm:$0xf]
    %v791 = vld [vmem:[#allocation13 + $0x54] sm:$0xf]
    %v792 = vld [vmem:[#allocation13 + $0x58] sm:$0xf]
    %v793 = vld [vmem:[#allocation13 + $0x5c] sm:$0xf]
    %v794 = vld [vmem:[#allocation13 + $0x60] sm:$0xf]
    %v795 = vld [vmem:[#allocation13 + $0x64] sm:$0xf]
    %v796 = vld [vmem:[#allocation13 + $0x68] sm:$0xf]
    %v797 = vld [vmem:[#allocation13 + $0x6c] sm:$0xf]
    %v798 = vld [vmem:[#allocation13 + $0x70] sm:$0xf]
    %v799 = vld [vmem:[#allocation13 + $0x74] sm:$0xf]
    %v800 = vld [vmem:[#allocation13 + $0x78] sm:$0xf]
    %v801 = vld [vmem:[#allocation13 + $0x7c] sm:$0xf]
    %v802 = vld [vmem:[%s9] sm:$0x1]
    %v804 = vperm.slane %v802, 0
    %v838 = vunpack.c.l.b16 %v770
    %v839 = vunpack.c.l.b16 %v771
    %v840 = vunpack.c.l.b16 %v772
    %v841 = vunpack.c.l.b16 %v773
    %v842 = vunpack.c.l.b16 %v774
    %v843 = vunpack.c.l.b16 %v775
    %v844 = vunpack.c.l.b16 %v776
    %v845 = vunpack.c.l.b16 %v777
    %v846 = vunpack.c.l.b16 %v778
    %v847 = vunpack.c.l.b16 %v779
    %v848 = vunpack.c.l.b16 %v780
    %v849 = vunpack.c.l.b16 %v781
    %v850 = vunpack.c.l.b16 %v782
    %v851 = vunpack.c.l.b16 %v783
    %v852 = vunpack.c.l.b16 %v784
    %v853 = vunpack.c.l.b16 %v785
    %v854 = vunpack.c.l.b16 %v786
    %v855 = vunpack.c.l.b16 %v787
    %v856 = vunpack.c.l.b16 %v788
    %v857 = vunpack.c.l.b16 %v789
    %v858 = vunpack.c.l.b16 %v790
    %v859 = vunpack.c.l.b16 %v791
    %v860 = vunpack.c.l.b16 %v792
    %v861 = vunpack.c.l.b16 %v793
    %v862 = vunpack.c.l.b16 %v794
    %v863 = vunpack.c.l.b16 %v795
    %v864 = vunpack.c.l.b16 %v796
    %v865 = vunpack.c.l.b16 %v797
    %v866 = vunpack.c.l.b16 %v798
    %v867 = vunpack.c.l.b16 %v799
    %v868 = vunpack.c.l.b16 %v800
    %v869 = vunpack.c.l.b16 %v801
    %v870 = vpack.c.b16 %v839, %v838
    %v871 = vpack.c.b16 %v841, %v840
    %v872 = vpack.c.b16 %v843, %v842
    %v873 = vpack.c.b16 %v845, %v844
    %v874 = vpack.c.b16 %v847, %v846
    %v875 = vpack.c.b16 %v849, %v848
    %v876 = vpack.c.b16 %v851, %v850
    %v877 = vpack.c.b16 %v853, %v852
    %v878 = vpack.c.b16 %v855, %v854
    %v879 = vpack.c.b16 %v857, %v856
    %v880 = vpack.c.b16 %v859, %v858
    %v881 = vpack.c.b16 %v861, %v860
    %v882 = vpack.c.b16 %v863, %v862
    %v883 = vpack.c.b16 %v865, %v864
    %v884 = vpack.c.b16 %v867, %v866
    %v885 = vpack.c.b16 %v869, %v868
    %902 = vmatpush.bf16.msra.mxu0 %v877
    %903 = vmatpush.bf16.msra.mxu0 %v876
    %904 = vmatpush.bf16.msra.mxu0 %v875
    %905 = vmatpush.bf16.msra.mxu0 %v874
    %906 = vmatpush.bf16.msra.mxu0 %v873
    %907 = vmatpush.bf16.msra.mxu0 %v872
    %908 = vmatpush.bf16.msra.mxu0 %v871
    %909 = vmatpush.bf16.msra.mxu0 %v870
    %910 = vmatmul.bf16.gmra.mxu0 %v768
    %v911 = vpop.f32.mrf.mxu0
    %v912 = vadd.f32 %v804, %v911
    %v913 = vpop.f32.mrf.mxu0
    %914 = vdwg.mxu0
    %915 = vmatpush.bf16.msra.mxu0 %v885
    %916 = vmatpush.bf16.msra.mxu0 %v884
    %917 = vmatpush.bf16.msra.mxu0 %v883
    %918 = vmatpush.bf16.msra.mxu0 %v882
    %919 = vmatpush.bf16.msra.mxu0 %v881
    %920 = vmatpush.bf16.msra.mxu0 %v880
    %921 = vmatpush.bf16.msra.mxu0 %v879
    %922 = vmatpush.bf16.msra.mxu0 %v878
    %923 = vmatmul.bf16.gmra.mxu0 %v769
    %v924 = vpop.f32.mrf.mxu0
    %v925 = vadd.f32 %v912, %v924
    %v926 = vpop.f32.mrf.mxu0
    %927 = vdwg.mxu0
    %v928 = vmax.f32 %v925, 0.0
    %v929 = vld [vmem:[#allocation8] sm:$0xff]
    %v930 = vmul.f32 %v928, %v929
    %v931 = vpack.c.bf16 %v930, %v930
    %v932 = vld [vmem:[#allocation14] sm:$0xf]
    %v933 = vld [vmem:[#allocation14 + $0x4] sm:$0xf]
    %v934 = vld [vmem:[#allocation14 + $0x8] sm:$0xf]
    %v935 = vld [vmem:[#allocation14 + $0xc] sm:$0xf]
    %v936 = vld [vmem:[#allocation14 + $0x10] sm:$0xf]
    %v937 = vld [vmem:[#allocation14 + $0x14] sm:$0xf]
    %v938 = vld [vmem:[#allocation14 + $0x18] sm:$0xf]
    %v939 = vld [vmem:[#allocation14 + $0x1c] sm:$0xf]
    %v940 = vld [vmem:[#allocation14 + $0x20] sm:$0xf]
    %v941 = vld [vmem:[#allocation14 + $0x24] sm:$0xf]
    %v942 = vld [vmem:[#allocation14 + $0x28] sm:$0xf]
    %v943 = vld [vmem:[#allocation14 + $0x2c] sm:$0xf]
    %v944 = vld [vmem:[#allocation14 + $0x30] sm:$0xf]
    %v945 = vld [vmem:[#allocation14 + $0x34] sm:$0xf]
    %v946 = vld [vmem:[#allocation14 + $0x38] sm:$0xf]
    %v947 = vld [vmem:[#allocation14 + $0x3c] sm:$0xf]
    %v948 = vld [vmem:[%s11] sm:$0x1]
    %v950 = vperm.slane %v948, 0
    %v968 = vunpack.c.l.b16 %v932
    %v969 = vunpack.c.l.b16 %v933
    %v970 = vunpack.c.l.b16 %v934
    %v971 = vunpack.c.l.b16 %v935
    %v972 = vunpack.c.l.b16 %v936
    %v973 = vunpack.c.l.b16 %v937
    %v974 = vunpack.c.l.b16 %v938
    %v975 = vunpack.c.l.b16 %v939
    %v976 = vunpack.c.l.b16 %v940
    %v977 = vunpack.c.l.b16 %v941
    %v978 = vunpack.c.l.b16 %v942
    %v979 = vunpack.c.l.b16 %v943
    %v980 = vunpack.c.l.b16 %v944
    %v981 = vunpack.c.l.b16 %v945
    %v982 = vunpack.c.l.b16 %v946
    %v983 = vunpack.c.l.b16 %v947
    %v984 = vpack.c.b16 %v969, %v968
    %v985 = vpack.c.b16 %v971, %v970
    %v986 = vpack.c.b16 %v973, %v972
    %v987 = vpack.c.b16 %v975, %v974
    %v988 = vpack.c.b16 %v977, %v976
    %v989 = vpack.c.b16 %v979, %v978
    %v990 = vpack.c.b16 %v981, %v980
    %v991 = vpack.c.b16 %v983, %v982
    %1000 = vmatpush.bf16.msra.mxu0 %v991
    %1001 = vmatpush.bf16.msra.mxu0 %v990
    %1002 = vmatpush.bf16.msra.mxu0 %v989
    %1003 = vmatpush.bf16.msra.mxu0 %v988
    %1004 = vmatpush.bf16.msra.mxu0 %v987
    %1005 = vmatpush.bf16.msra.mxu0 %v986
    %1006 = vmatpush.bf16.msra.mxu0 %v985
    %1007 = vmatpush.bf16.msra.mxu0 %v984
    %1008 = vmatmul.bf16.gmra.mxu0 %v931
    %v1009 = vpop.f32.mrf.mxu0
    %v1010 = vadd.f32 %v950, %v1009
    %v1011 = vpop.f32.mrf.mxu0
    %1012 = vdwg.mxu0
    %v1013 = vlaneseq
    %v1014 = vand.u32 %v1013, 127
    %vm1015 = vcmp.lt.s32.totalorder %v1014, 4
    %v1016 = vsel %vm1015, %v1010, 0.0
    %1017 = vadd.xlane.f32.xlu0 %v1016
    %v1018 = vpop.xlane.xlu0 %1017
    %v1019 = vmul.f32 %v1018, 0.25
    %vm1020 = vcmp.eq.s32.totalorder %v1014, 4
    %v1021 = vsel %vm1020, %v1010, 0.0
    %1022 = vadd.xlane.f32.xlu0 %v1021
    %v1023 = vpop.xlane.xlu0 %1022
    %v1024 = vsub.f32 %v1023, %v1019
    %v1025 = vadd.f32 %v1010, %v1024
    %v1026 = vsel %vm1015, %v1025, 0.0
    %1027 = vst [vmem:[#allocation16] sm:$0xff] %v1026
    // Predicated region
    $region82: #{tpu_custom_call.1} parent=1 // pred_check
      _
    $region83: #{tpu_custom_call.1} parent=1 // pred_check_branch
      %1029 = sbr.rel (0) target = $region85
    $region84: #{tpu_custom_call.1} parent=1 // pred_region
      %1031 = vsyncadd [#allocation4], 0
      %s1033 = sshll.u32 [#allocation16], 4
      %s1034 = int_to_ptr.vmem [resolvable:$true] %s1033
      %s1035 = sshll.u32 %s12, 4
      %s1036 = int_to_ptr.hbm [resolvable:$true] %s1035
      %1038 = dma.vmem_to_hbm [thread:$0]  %s1034, 128, %s1036, [#allocation4]
    $region85: #{tpu_custom_call.1} parent=1 // pred_fallthru
      _
    // Predicated region
    $region86: #{tpu_custom_call.1} parent=1 // pred_check
      _
    $region87: #{tpu_custom_call.1} parent=1 // pred_check_branch
      %1040 = sbr.rel (0) target = $region89
    $region88: #{tpu_custom_call.1} parent=1 // pred_region
      %1042 = dma.done [#allocation4], 128
    $region89: #{tpu_custom_call.1} parent=1 // pred_fallthru
      _
    %1043 = vsyncpa [#allocation3], 1
    %1044 = vsyncpa [#allocation6], 1
    %1045 = vsyncpa [#allocation9], 1
    %1046 = vsyncpa [#allocation12], 1
    %1047 = vsyncpa [#allocation15], 1
    %1048 = vsyncpa [#allocation4], 1

</llo_original>
